<compile_context>
chip_gen: v5e
topology: v5e:2x2
jax: 0.10.0
libtpu: 0.0.40
codegen_flags: <defaults>
</compile_context>

<pallas_src>
import functools

import jax
import jax.numpy as jnp
from jax.experimental import pallas as pl
from jax.experimental.pallas import tpu as pltpu

HIDDEN = [26, 13]
LATENT_DIM = 2
H0, H1 = HIDDEN
LD = LATENT_DIM
OUT_ROWS = 8  # one full f32 sublane tile: rows = [z(2); mu(2); logvar(2); pad(2)]


def cvae_fwd_kernel(x_ref, eps_ref, w1_ref, w2_ref, wa_ref, wb_ref,
                    b1_ref, b2_ref, ba_ref, bb_ref, out_ref):
    """One batch tile.  Batch lives on the LANE axis of every intermediate.

    Output-packing trick (keeps every op a full-tile matmul/elementwise op):
      head_a = [mu; mu; logvar; 0]      (wa = [Wmu; Wmu; Wlv; 0])
      head_b = [logvar; 0; 0; 0]        (wb = [Wlv; 0; 0; 0])
      eps    = [noise; 0; 0; 0]         (8-row carrier built in the wrapper)
      out    = head_a + eps * exp(0.5 * head_b)
             = [mu + eps*std; mu; logvar; 0] = [z; mu; logvar; 0]
    """
    x = x_ref[...]                                             # (block_b, F) f32

    # fc1 + ReLU, transposed output: (H0, F) x (block_b, F)^T -> (H0, block_b).
    h1 = jax.lax.dot_general(w1_ref[...], x, (((1,), (1,)), ((), ())),
                             preferred_element_type=jnp.float32) + b1_ref[...]
    h1 = jnp.maximum(h1, 0.0)

    # fc2 + ReLU: (H1, H0) @ (H0, B) -> (H1, B).
    h2 = jnp.dot(w2_ref[...], h1, preferred_element_type=jnp.float32) + b2_ref[...]
    h2 = jnp.maximum(h2, 0.0)

    # Two 8-row fused heads (~200 FLOPs/column total -> MXU cost irrelevant).
    head_a = jnp.dot(wa_ref[...], h2, preferred_element_type=jnp.float32) + ba_ref[...]
    head_b = jnp.dot(wb_ref[...], h2, preferred_element_type=jnp.float32) + bb_ref[...]

    # Reparameterize + pack: one unmasked (8, block_b) store.
    # (Garbage lanes of a ragged boundary block stay lane-local and are masked
    #  out by Pallas on writeback.)
    out_ref[...] = head_a + eps_ref[...] * jnp.exp(0.5 * head_b)


def _choose_block_b(batch):
    """<=2 grid steps (one per v7x TensorCore), 256-lane MXU-friendly multiples,
    capped at 1024 lanes (past that, vreg spill pressure grows with no benefit
    since per-step grid overhead is already amortized).  On single-TC parts
    (v5e/v6e) pass block_b explicitly so n_blocks == 1 if chasing the last
    ~0.35 us of per-step overhead."""
    if batch <= 256:
        return batch                      # single full-array block
    return min(1024, 256 * pl.cdiv(pl.cdiv(batch, 2), 256))


@functools.partial(jax.jit, static_argnames=("block_b",))
def ffnn_cvae_forward(x, eps, params, *, block_b=None):
    """x: (B, F) f32;  eps: (LD, B) f32 reparameterization noise.

    Returns (z, mu, logvar), each (B, LD) f32.
    """
    B, F = x.shape
    if block_b is None:
        block_b = _choose_block_b(B)
    n_blocks = pl.cdiv(B, block_b)

    # 8-row eps carrier (rows LD.. are zero).  OUT_ROWS*B*4 bytes -> negligible
    # next to x; lets the kernel avoid any sublane slicing / concatenation.
    eps_ext = jnp.concatenate(
        [eps.astype(jnp.float32), jnp.zeros((OUT_ROWS - LD, B), jnp.float32)],
        axis=0)

    rep = lambda shape: pl.BlockSpec(shape, lambda i: (0, 0))  # resident weights

    packed = pl.pallas_call(
        cvae_fwd_kernel,
        grid=(n_blocks,),
        in_specs=[
            pl.BlockSpec((block_b, F), lambda i: (i, 0)),         # x, natural layout
            pl.BlockSpec((OUT_ROWS, block_b), lambda i: (0, i)),  # eps carrier
            rep((H0, F)),           # W1
            rep((H1, H0)),          # W2
            rep((OUT_ROWS, H1)),    # head A = [Wmu; Wmu; Wlv; 0]
            rep((OUT_ROWS, H1)),    # head B = [Wlv; 0; 0; 0]
            rep((H0, 1)),           # b1
            rep((H1, 1)),           # b2
            rep((OUT_ROWS, 1)),     # bias A
            rep((OUT_ROWS, 1)),     # bias B
        ],
        out_specs=pl.BlockSpec((OUT_ROWS, block_b), lambda i: (0, i)),
        out_shape=jax.ShapeDtypeStruct((OUT_ROWS, B), jnp.float32),
        compiler_params=pltpu.CompilerParams(
            dimension_semantics=("parallel",)),
    )(x.astype(jnp.float32), eps_ext,
      params["w1"], params["w2"], params["whead_a"], params["whead_b"],
      params["b1"], params["b2"], params["bhead_a"], params["bhead_b"])

    # One trivial transpose back to the caller-facing (B, LD) layout.
    z = packed[0:LD].T
    mu = packed[LD:2 * LD].T
    logvar = packed[2 * LD:3 * LD].T
    return z, mu, logvar


def init_params(key, input_shape):
    """nn.Linear-style U(-1/sqrt(fan_in), 1/sqrt(fan_in)) init, PyTorch layout
    (out_features, in_features), everything f32.  fc3_mu / fc3_logvar are packed
    into the two tile-aligned 8-row head matrices used by the kernel."""
    ws, bs = [], []
    for fan_out, fan_in in [(H0, input_shape), (H1, H0), (LD, H1), (LD, H1)]:
        key, kw, kb = jax.random.split(key, 3)
        bound = float(fan_in) ** -0.5
        ws.append(jax.random.uniform(kw, (fan_out, fan_in), jnp.float32, -bound, bound))
        bs.append(jax.random.uniform(kb, (fan_out, 1), jnp.float32, -bound, bound))
    w1, w2, wmu, wlv = ws
    b1, b2, bmu, blv = bs
    zw = jnp.zeros((LD, H1), jnp.float32)
    zb = jnp.zeros((LD, 1), jnp.float32)
    return {
        "w1": w1, "w2": w2, "b1": b1, "b2": b2,
        # head A rows [Wmu; Wmu; Wlv; 0]  ->  out rows [z-base(mu); mu; logvar; 0]
        "whead_a": jnp.concatenate([wmu, wmu, wlv, zw], axis=0),
        "bhead_a": jnp.concatenate([bmu, bmu, blv, zb], axis=0),
        # head B rows [Wlv; 0; 0; 0]      ->  logvar aligned with the eps rows
        "whead_b": jnp.concatenate([wlv, zw, zw, zw], axis=0),
        "bhead_b": jnp.concatenate([blv, zb, zb, zb], axis=0),
        # raw heads kept only for the pure-JAX reference
        "wmu": wmu, "wlv": wlv, "bmu": bmu, "blv": blv,
    }


def reference_forward(x, eps, params):
    """Pure-JAX f32 reference with the same parameter values."""
    h = jnp.maximum(x @ params["w1"].T + params["b1"][:, 0], 0.0)
    h = jnp.maximum(h @ params["w2"].T + params["b2"][:, 0], 0.0)
    mu = h @ params["wmu"].T + params["bmu"][:, 0]
    logvar = h @ params["wlv"].T + params["blv"][:, 0]
    z = eps.T * jnp.exp(0.5 * logvar) + mu
    return z, mu, logvar


if __name__ == "__main__":
    B = 500            # not a multiple of the 256-lane tile -> exercises the
                       # Pallas-masked ragged boundary block (no jnp.pad copy)
    INPUT_SHAPE = 32   # the module's `input_shape` (feature dim)

    key = jax.random.PRNGKey(0)
    key, kx, keps, kparams = jax.random.split(key, 4)
    x = jax.random.normal(kx, (B, INPUT_SHAPE), jnp.float32)
    # Reparameterization noise: the torch module samples it internally; it is an
    # explicit input here for determinism, generated directly in (LD, B) layout.
    eps = jax.random.normal(keps, (LATENT_DIM, B), jnp.float32)
    params = init_params(kparams, INPUT_SHAPE)

    # Default tile choice -> block_b=256, 2 "parallel" grid steps (one per v7x TC).
    z, mu, logvar = ffnn_cvae_forward(x, eps, params)
    jax.block_until_ready((z, mu, logvar))

    z_ref, mu_ref, lv_ref = reference_forward(x, eps, params)
    # All-f32 storage/accumulation; tolerance covers MXU internal pass precision.
    assert jnp.allclose(mu, mu_ref, atol=1e-2, rtol=1e-2), "mu mismatch"
    assert jnp.allclose(logvar, lv_ref, atol=1e-2, rtol=1e-2), "logvar mismatch"
    assert jnp.allclose(z, z_ref, atol=1e-2, rtol=1e-2), "z mismatch"
    print("KERNEL_OK")
</pallas_src>

<mosaic_0001>
module attributes {stable_mosaic.version = 11 : i64} {
  func.func @cvae_fwd_kernel(%arg0: i32, %arg1: memref<256x32xf32, #tpu.memory_space<vmem>>, %arg2: memref<8x256xf32, #tpu.memory_space<vmem>>, %arg3: memref<26x32xf32, #tpu.memory_space<vmem>>, %arg4: memref<13x26xf32, #tpu.memory_space<vmem>>, %arg5: memref<8x13xf32, #tpu.memory_space<vmem>>, %arg6: memref<8x13xf32, #tpu.memory_space<vmem>>, %arg7: memref<26x1xf32, #tpu.memory_space<vmem>>, %arg8: memref<13x1xf32, #tpu.memory_space<vmem>>, %arg9: memref<8x1xf32, #tpu.memory_space<vmem>>, %arg10: memref<8x1xf32, #tpu.memory_space<vmem>>, %arg11: memref<8x256xf32, #tpu.memory_space<vmem>>) attributes {dimension_semantics = [#tpu.dimension_semantics<parallel>], iteration_bounds = array<i64: 2>, scalar_prefetch = 0 : i64, scratch_operands = 0 : i64, tpu.core_type = #tpu.core_type<tc>, window_params = [{transform_indices = @transform_0, window_bounds = array<i64: 256, 32>}, {transform_indices = @transform_1, window_bounds = array<i64: 8, 256>}, {pipeline_mode = #tpu.pipeline_mode<synchronous>, transform_indices = @transform_2, window_bounds = array<i64: 26, 32>}, {pipeline_mode = #tpu.pipeline_mode<synchronous>, transform_indices = @transform_3, window_bounds = array<i64: 13, 26>}, {pipeline_mode = #tpu.pipeline_mode<synchronous>, transform_indices = @transform_4, window_bounds = array<i64: 8, 13>}, {pipeline_mode = #tpu.pipeline_mode<synchronous>, transform_indices = @transform_5, window_bounds = array<i64: 8, 13>}, {pipeline_mode = #tpu.pipeline_mode<synchronous>, transform_indices = @transform_6, window_bounds = array<i64: 26, 1>}, {pipeline_mode = #tpu.pipeline_mode<synchronous>, transform_indices = @transform_7, window_bounds = array<i64: 13, 1>}, {pipeline_mode = #tpu.pipeline_mode<synchronous>, transform_indices = @transform_8, window_bounds = array<i64: 8, 1>}, {pipeline_mode = #tpu.pipeline_mode<synchronous>, transform_indices = @transform_9, window_bounds = array<i64: 8, 1>}, {transform_indices = @transform_10, window_bounds = array<i64: 8, 256>}]} {
    %c0 = arith.constant 0 : index
    %c0_0 = arith.constant 0 : index
    %0 = vector.load %arg1[%c0, %c0_0] : memref<256x32xf32, #tpu.memory_space<vmem>>, vector<256x32xf32>
    %c0_1 = arith.constant 0 : index
    %c0_2 = arith.constant 0 : index
    %1 = vector.load %arg3[%c0_1, %c0_2] : memref<26x32xf32, #tpu.memory_space<vmem>>, vector<26x32xf32>
    %cst = arith.constant dense<0.000000e+00> : vector<26x256xf32>
    %2 = tpu.matmul %1, %0, %cst {dimension_numbers = #tpu.dot_dimension_numbers<[1], [1], [0], [0], [0, 0, 1, 0], [], []>} : vector<26x32xf32>, vector<256x32xf32>, vector<26x256xf32> -> vector<26x256xf32>
    %c0_3 = arith.constant 0 : index
    %c0_4 = arith.constant 0 : index
    %3 = vector.load %arg7[%c0_3, %c0_4] : memref<26x1xf32, #tpu.memory_space<vmem>>, vector<26x1xf32>
    %4 = vector.broadcast %3 : vector<26x1xf32> to vector<26x256xf32>
    %5 = arith.addf %2, %4 : vector<26x256xf32>
    %cst_5 = arith.constant 0.000000e+00 : f32
    %6 = vector.broadcast %cst_5 : f32 to vector<26x256xf32>
    %7 = arith.maximumf %5, %6 : vector<26x256xf32>
    %c0_6 = arith.constant 0 : index
    %c0_7 = arith.constant 0 : index
    %8 = vector.load %arg4[%c0_6, %c0_7] : memref<13x26xf32, #tpu.memory_space<vmem>>, vector<13x26xf32>
    %cst_8 = arith.constant dense<0.000000e+00> : vector<13x256xf32>
    %9 = tpu.matmul %8, %7, %cst_8 {dimension_numbers = #tpu.dot_dimension_numbers<[1], [0], [0], [1], [0, 0, 1, 1], [], []>} : vector<13x26xf32>, vector<26x256xf32>, vector<13x256xf32> -> vector<13x256xf32>
    %c0_9 = arith.constant 0 : index
    %c0_10 = arith.constant 0 : index
    %10 = vector.load %arg8[%c0_9, %c0_10] : memref<13x1xf32, #tpu.memory_space<vmem>>, vector<13x1xf32>
    %11 = vector.broadcast %10 : vector<13x1xf32> to vector<13x256xf32>
    %12 = arith.addf %9, %11 : vector<13x256xf32>
    %cst_11 = arith.constant 0.000000e+00 : f32
    %13 = vector.broadcast %cst_11 : f32 to vector<13x256xf32>
    %14 = arith.maximumf %12, %13 : vector<13x256xf32>
    %c0_12 = arith.constant 0 : index
    %c0_13 = arith.constant 0 : index
    %15 = vector.load %arg5[%c0_12, %c0_13] : memref<8x13xf32, #tpu.memory_space<vmem>>, vector<8x13xf32>
    %cst_14 = arith.constant dense<0.000000e+00> : vector<8x256xf32>
    %16 = tpu.matmul %15, %14, %cst_14 {dimension_numbers = #tpu.dot_dimension_numbers<[1], [0], [0], [1], [0, 0, 1, 1], [], []>} : vector<8x13xf32>, vector<13x256xf32>, vector<8x256xf32> -> vector<8x256xf32>
    %c0_15 = arith.constant 0 : index
    %c0_16 = arith.constant 0 : index
    %17 = vector.load %arg9[%c0_15, %c0_16] : memref<8x1xf32, #tpu.memory_space<vmem>>, vector<8x1xf32>
    %18 = vector.broadcast %17 : vector<8x1xf32> to vector<8x256xf32>
    %19 = arith.addf %16, %18 : vector<8x256xf32>
    %c0_17 = arith.constant 0 : index
    %c0_18 = arith.constant 0 : index
    %20 = vector.load %arg6[%c0_17, %c0_18] : memref<8x13xf32, #tpu.memory_space<vmem>>, vector<8x13xf32>
    %cst_19 = arith.constant dense<0.000000e+00> : vector<8x256xf32>
    %21 = tpu.matmul %20, %14, %cst_19 {dimension_numbers = #tpu.dot_dimension_numbers<[1], [0], [0], [1], [0, 0, 1, 1], [], []>} : vector<8x13xf32>, vector<13x256xf32>, vector<8x256xf32> -> vector<8x256xf32>
    %c0_20 = arith.constant 0 : index
    %c0_21 = arith.constant 0 : index
    %22 = vector.load %arg10[%c0_20, %c0_21] : memref<8x1xf32, #tpu.memory_space<vmem>>, vector<8x1xf32>
    %23 = vector.broadcast %22 : vector<8x1xf32> to vector<8x256xf32>
    %24 = arith.addf %21, %23 : vector<8x256xf32>
    %c0_22 = arith.constant 0 : index
    %c0_23 = arith.constant 0 : index
    %25 = vector.load %arg2[%c0_22, %c0_23] : memref<8x256xf32, #tpu.memory_space<vmem>>, vector<8x256xf32>
    %cst_24 = arith.constant 5.000000e-01 : f32
    %26 = vector.broadcast %cst_24 : f32 to vector<8x256xf32>
    %27 = arith.mulf %26, %24 : vector<8x256xf32>
    %28 = math.exp %27 : vector<8x256xf32>
    %29 = arith.mulf %25, %28 : vector<8x256xf32>
    %30 = arith.addf %19, %29 : vector<8x256xf32>
    %c0_25 = arith.constant 0 : index
    %c0_26 = arith.constant 0 : index
    %31 = vector.load %arg11[%c0_25, %c0_26] : memref<8x256xf32, #tpu.memory_space<vmem>>, vector<8x256xf32>
    tpu.vector_store %arg11[%c0_25, %c0_26], %30 {strides = array<i32>} : memref<8x256xf32, #tpu.memory_space<vmem>>, vector<8x256xf32>,
    return
  }
  func.func @transform_0(%arg0: i32) -> (i32, i32) {
    %c0_i32 = arith.constant 0 : i32
    %c0_i32_0 = arith.constant 0 : i32
    return %arg0, %c0_i32 : i32, i32
  }
  func.func @transform_1(%arg0: i32) -> (i32, i32) {
    %c0_i32 = arith.constant 0 : i32
    %c0_i32_0 = arith.constant 0 : i32
    return %c0_i32, %arg0 : i32, i32
  }
  func.func @transform_2(%arg0: i32) -> (i32, i32) {
    %c0_i32 = arith.constant 0 : i32
    %c0_i32_0 = arith.constant 0 : i32
    %c0_i32_1 = arith.constant 0 : i32
    return %c0_i32, %c0_i32_0 : i32, i32
  }
  func.func @transform_3(%arg0: i32) -> (i32, i32) {
    %c0_i32 = arith.constant 0 : i32
    %c0_i32_0 = arith.constant 0 : i32
    %c0_i32_1 = arith.constant 0 : i32
    return %c0_i32, %c0_i32_0 : i32, i32
  }
  func.func @transform_4(%arg0: i32) -> (i32, i32) {
    %c0_i32 = arith.constant 0 : i32
    %c0_i32_0 = arith.constant 0 : i32
    %c0_i32_1 = arith.constant 0 : i32
    return %c0_i32, %c0_i32_0 : i32, i32
  }
  func.func @transform_5(%arg0: i32) -> (i32, i32) {
    %c0_i32 = arith.constant 0 : i32
    %c0_i32_0 = arith.constant 0 : i32
    %c0_i32_1 = arith.constant 0 : i32
    return %c0_i32, %c0_i32_0 : i32, i32
  }
  func.func @transform_6(%arg0: i32) -> (i32, i32) {
    %c0_i32 = arith.constant 0 : i32
    %c0_i32_0 = arith.constant 0 : i32
    %c0_i32_1 = arith.constant 0 : i32
    return %c0_i32, %c0_i32_0 : i32, i32
  }
  func.func @transform_7(%arg0: i32) -> (i32, i32) {
    %c0_i32 = arith.constant 0 : i32
    %c0_i32_0 = arith.constant 0 : i32
    %c0_i32_1 = arith.constant 0 : i32
    return %c0_i32, %c0_i32_0 : i32, i32
  }
  func.func @transform_8(%arg0: i32) -> (i32, i32) {
    %c0_i32 = arith.constant 0 : i32
    %c0_i32_0 = arith.constant 0 : i32
    %c0_i32_1 = arith.constant 0 : i32
    return %c0_i32, %c0_i32_0 : i32, i32
  }
  func.func @transform_9(%arg0: i32) -> (i32, i32) {
    %c0_i32 = arith.constant 0 : i32
    %c0_i32_0 = arith.constant 0 : i32
    %c0_i32_1 = arith.constant 0 : i32
    return %c0_i32, %c0_i32_0 : i32, i32
  }
  func.func @transform_10(%arg0: i32) -> (i32, i32) {
    %c0_i32 = arith.constant 0 : i32
    %c0_i32_0 = arith.constant 0 : i32
    return %c0_i32, %arg0 : i32, i32
  }
}

</mosaic_0001>

<llo_original>
// kernel: ffnn_cvae_forward.1
$region0: #{ffnn_cvae_forward.1}
  #allocation0 [shape = 'u32[]', space=smem, size = 0x4, offset = 0x4, fixed_abs, tag = 'smem constant byte address 0x4 - core index']
  #allocation1 [shape = 'u32[72,128]{1,0:T(1,128)}', space=vmem, size = 0x9000, scoped, tag = 'internal scratch']
  %s0 = inlined_call_operand.vmem [shape: f32[500,32], index: 0, kind: input, shape index: {}]
  %s1 = inlined_call_operand.vmem [shape: f32[8,500], index: 1, kind: input, shape index: {}]
  %s2 = inlined_call_operand.vmem [shape: f32[26,32], index: 2, kind: input, shape index: {}]
  %s3 = inlined_call_operand.vmem [shape: f32[13,26], index: 3, kind: input, shape index: {}]
  %s4 = inlined_call_operand.vmem [shape: f32[8,13], index: 4, kind: input, shape index: {}]
  %s5 = inlined_call_operand.vmem [shape: f32[8,13], index: 5, kind: input, shape index: {}]
  %s6 = inlined_call_operand.vmem [shape: f32[26,1], index: 6, kind: input, shape index: {}]
  %s7 = inlined_call_operand.vmem [shape: f32[13,1], index: 7, kind: input, shape index: {}]
  %s8 = inlined_call_operand.vmem [shape: f32[8,1], index: 8, kind: input, shape index: {}]
  %s9 = inlined_call_operand.vmem [shape: f32[8,1], index: 9, kind: input, shape index: {}]
  %s10 = inlined_call_operand.vmem [shape: f32[8,500], index: 10, kind: output, shape index: {}]
  %s11 = sld [smem:[#allocation0]]
  $region73: #{ffnn_cvae_forward.1} parent=0
    _
  %s13 = ssub.s32 1, %s11
  %s14 = scalar_select 0, %s13, %s11
  loop: start=0, step=1, limit=4
  $region2: #{ffnn_cvae_forward.1} parent=0 // loop_pre_header
    _
  $region3: #{ffnn_cvae_forward.1} parent=0 // loop_header
    %s16 = sphi 0, %s20
    %p17 = scmp.ge.s32.totalorder %s16, 4
    %s26 = sphi 0, %s28
    %s29 = sphi 0, %s26
    %s30 = sphi 0, %s29
    %s46 = sphi 0, %s30
    %s52 = sphi 0, %s54
    %s55 = sphi 0, %s52
    %s56 = sphi 0, %s55
    %s72 = sphi 0, %s56
    %s76 = sphi 0, %s76
    %s78 = sphi 0, %s76
    %s79 = sphi 0, %s78
    %s93 = sphi 0, %s79
    %s97 = sphi 0, %s97
    %s99 = sphi 0, %s97
    %s100 = sphi 0, %s99
    %s114 = sphi 0, %s100
    %s118 = sphi 0, %s118
    %s120 = sphi 0, %s118
    %s121 = sphi 0, %s120
    %s135 = sphi 0, %s121
    %s139 = sphi 0, %s139
    %s141 = sphi 0, %s139
    %s142 = sphi 0, %s141
    %s156 = sphi 0, %s142
    %s160 = sphi 0, %s160
    %s162 = sphi 0, %s160
    %s163 = sphi 0, %s162
    %s177 = sphi 0, %s163
    %s181 = sphi 0, %s181
    %s183 = sphi 0, %s181
    %s184 = sphi 0, %s183
    %s198 = sphi 0, %s184
    %s202 = sphi 0, %s202
    %s204 = sphi 0, %s202
    %s205 = sphi 0, %s204
    %s219 = sphi 0, %s205
    %s223 = sphi 0, %s223
    %s225 = sphi 0, %s223
    %s226 = sphi 0, %s225
    %s240 = sphi 0, %s226
    %s246 = sphi 0, %s248
    %s249 = sphi 0, %s246
    %s250 = sphi 0, %s249
    %s266 = sphi 0, %s250
  $region4: #{ffnn_cvae_forward.1} parent=0 // loop_header_branch
    %19 = sbr.rel (%p17) target = $region8
  $region5: #{ffnn_cvae_forward.1} parent=0 // loop_body
    %s21 = ssub.s32 %s16, 1
    %s22 = ssub.s32 %s16, 2
    %s23 = sadd.s32 %s16, 1
    %s24 = ssub.s32 %s16, %s23
    %p25 = scmp.eq.s32.totalorder %s24, 0
    %s27 = sadd.s32 %s26, 1
    %s28 = scalar_select %p25, %s26, %s27
    %p31 = pneg %p25
    %p32 = scmp.eq.s32.totalorder %s16, 1
    %p33 = por %p31, %p32
    %p34 = scmp.ne.s32.totalorder %s26, %s29
    %p35 = scmp.eq.s32.totalorder %s16, 0
    %p36 = por %p34, %p35
    %p37 = scmp.ne.s32.totalorder %s26, %s29
    %p38 = scmp.eq.s32.totalorder %s21, 1
    %p39 = por %p37, %p38
    %p40 = scmp.ne.s32.totalorder %s29, %s30
    %p41 = scmp.eq.s32.totalorder %s21, 0
    %p42 = por %p40, %p41
    %p43 = scmp.ne.s32.totalorder %s29, %s30
    %p44 = scmp.eq.s32.totalorder %s22, 1
    %p45 = por %p43, %p44
    %p47 = scmp.ne.s32.totalorder %s30, %s46
    %p48 = scmp.eq.s32.totalorder %s22, 0
    %p49 = por %p47, %p48
    %s50 = ssub.s32 %s16, %s23
    %p51 = scmp.eq.s32.totalorder %s50, 0
    %s53 = sadd.s32 %s52, 1
    %s54 = scalar_select %p51, %s52, %s53
    %p57 = pneg %p51
    %p58 = scmp.eq.s32.totalorder %s16, 1
    %p59 = por %p57, %p58
    %p60 = scmp.ne.s32.totalorder %s52, %s55
    %p61 = scmp.eq.s32.totalorder %s16, 0
    %p62 = por %p60, %p61
    %p63 = scmp.ne.s32.totalorder %s52, %s55
    %p64 = scmp.eq.s32.totalorder %s21, 1
    %p65 = por %p63, %p64
    %p66 = scmp.ne.s32.totalorder %s55, %s56
    %p67 = scmp.eq.s32.totalorder %s21, 0
    %p68 = por %p66, %p67
    %p69 = scmp.ne.s32.totalorder %s55, %s56
    %p70 = scmp.eq.s32.totalorder %s22, 1
    %p71 = por %p69, %p70
    %p73 = scmp.ne.s32.totalorder %s56, %s72
    %p74 = scmp.eq.s32.totalorder %s22, 0
    %p75 = por %p73, %p74
    %s77 = sadd.s32 %s76, 1
    %p80 = scmp.eq.s32.totalorder %s16, 1
    %p81 = scmp.ne.s32.totalorder %s76, %s78
    %p82 = scmp.eq.s32.totalorder %s16, 0
    %p83 = por %p81, %p82
    %p84 = scmp.ne.s32.totalorder %s76, %s78
    %p85 = scmp.eq.s32.totalorder %s21, 1
    %p86 = por %p84, %p85
    %p87 = scmp.ne.s32.totalorder %s78, %s79
    %p88 = scmp.eq.s32.totalorder %s21, 0
    %p89 = por %p87, %p88
    %p90 = scmp.ne.s32.totalorder %s78, %s79
    %p91 = scmp.eq.s32.totalorder %s22, 1
    %p92 = por %p90, %p91
    %p94 = scmp.ne.s32.totalorder %s79, %s93
    %p95 = scmp.eq.s32.totalorder %s22, 0
    %p96 = por %p94, %p95
    %s98 = sadd.s32 %s97, 1
    %p101 = scmp.eq.s32.totalorder %s16, 1
    %p102 = scmp.ne.s32.totalorder %s97, %s99
    %p103 = scmp.eq.s32.totalorder %s16, 0
    %p104 = por %p102, %p103
    %p105 = scmp.ne.s32.totalorder %s97, %s99
    %p106 = scmp.eq.s32.totalorder %s21, 1
    %p107 = por %p105, %p106
    %p108 = scmp.ne.s32.totalorder %s99, %s100
    %p109 = scmp.eq.s32.totalorder %s21, 0
    %p110 = por %p108, %p109
    %p111 = scmp.ne.s32.totalorder %s99, %s100
    %p112 = scmp.eq.s32.totalorder %s22, 1
    %p113 = por %p111, %p112
    %p115 = scmp.ne.s32.totalorder %s100, %s114
    %p116 = scmp.eq.s32.totalorder %s22, 0
    %p117 = por %p115, %p116
    %s119 = sadd.s32 %s118, 1
    %p122 = scmp.eq.s32.totalorder %s16, 1
    %p123 = scmp.ne.s32.totalorder %s118, %s120
    %p124 = scmp.eq.s32.totalorder %s16, 0
    %p125 = por %p123, %p124
    %p126 = scmp.ne.s32.totalorder %s118, %s120
    %p127 = scmp.eq.s32.totalorder %s21, 1
    %p128 = por %p126, %p127
    %p129 = scmp.ne.s32.totalorder %s120, %s121
    %p130 = scmp.eq.s32.totalorder %s21, 0
    %p131 = por %p129, %p130
    %p132 = scmp.ne.s32.totalorder %s120, %s121
    %p133 = scmp.eq.s32.totalorder %s22, 1
    %p134 = por %p132, %p133
    %p136 = scmp.ne.s32.totalorder %s121, %s135
    %p137 = scmp.eq.s32.totalorder %s22, 0
    %p138 = por %p136, %p137
    %s140 = sadd.s32 %s139, 1
    %p143 = scmp.eq.s32.totalorder %s16, 1
    %p144 = scmp.ne.s32.totalorder %s139, %s141
    %p145 = scmp.eq.s32.totalorder %s16, 0
    %p146 = por %p144, %p145
    %p147 = scmp.ne.s32.totalorder %s139, %s141
    %p148 = scmp.eq.s32.totalorder %s21, 1
    %p149 = por %p147, %p148
    %p150 = scmp.ne.s32.totalorder %s141, %s142
    %p151 = scmp.eq.s32.totalorder %s21, 0
    %p152 = por %p150, %p151
    %p153 = scmp.ne.s32.totalorder %s141, %s142
    %p154 = scmp.eq.s32.totalorder %s22, 1
    %p155 = por %p153, %p154
    %p157 = scmp.ne.s32.totalorder %s142, %s156
    %p158 = scmp.eq.s32.totalorder %s22, 0
    %p159 = por %p157, %p158
    %s161 = sadd.s32 %s160, 1
    %p164 = scmp.eq.s32.totalorder %s16, 1
    %p165 = scmp.ne.s32.totalorder %s160, %s162
    %p166 = scmp.eq.s32.totalorder %s16, 0
    %p167 = por %p165, %p166
    %p168 = scmp.ne.s32.totalorder %s160, %s162
    %p169 = scmp.eq.s32.totalorder %s21, 1
    %p170 = por %p168, %p169
    %p171 = scmp.ne.s32.totalorder %s162, %s163
    %p172 = scmp.eq.s32.totalorder %s21, 0
    %p173 = por %p171, %p172
    %p174 = scmp.ne.s32.totalorder %s162, %s163
    %p175 = scmp.eq.s32.totalorder %s22, 1
    %p176 = por %p174, %p175
    %p178 = scmp.ne.s32.totalorder %s163, %s177
    %p179 = scmp.eq.s32.totalorder %s22, 0
    %p180 = por %p178, %p179
    %s182 = sadd.s32 %s181, 1
    %p185 = scmp.eq.s32.totalorder %s16, 1
    %p186 = scmp.ne.s32.totalorder %s181, %s183
    %p187 = scmp.eq.s32.totalorder %s16, 0
    %p188 = por %p186, %p187
    %p189 = scmp.ne.s32.totalorder %s181, %s183
    %p190 = scmp.eq.s32.totalorder %s21, 1
    %p191 = por %p189, %p190
    %p192 = scmp.ne.s32.totalorder %s183, %s184
    %p193 = scmp.eq.s32.totalorder %s21, 0
    %p194 = por %p192, %p193
    %p195 = scmp.ne.s32.totalorder %s183, %s184
    %p196 = scmp.eq.s32.totalorder %s22, 1
    %p197 = por %p195, %p196
    %p199 = scmp.ne.s32.totalorder %s184, %s198
    %p200 = scmp.eq.s32.totalorder %s22, 0
    %p201 = por %p199, %p200
    %s203 = sadd.s32 %s202, 1
    %p206 = scmp.eq.s32.totalorder %s16, 1
    %p207 = scmp.ne.s32.totalorder %s202, %s204
    %p208 = scmp.eq.s32.totalorder %s16, 0
    %p209 = por %p207, %p208
    %p210 = scmp.ne.s32.totalorder %s202, %s204
    %p211 = scmp.eq.s32.totalorder %s21, 1
    %p212 = por %p210, %p211
    %p213 = scmp.ne.s32.totalorder %s204, %s205
    %p214 = scmp.eq.s32.totalorder %s21, 0
    %p215 = por %p213, %p214
    %p216 = scmp.ne.s32.totalorder %s204, %s205
    %p217 = scmp.eq.s32.totalorder %s22, 1
    %p218 = por %p216, %p217
    %p220 = scmp.ne.s32.totalorder %s205, %s219
    %p221 = scmp.eq.s32.totalorder %s22, 0
    %p222 = por %p220, %p221
    %s224 = sadd.s32 %s223, 1
    %p227 = scmp.eq.s32.totalorder %s16, 1
    %p228 = scmp.ne.s32.totalorder %s223, %s225
    %p229 = scmp.eq.s32.totalorder %s16, 0
    %p230 = por %p228, %p229
    %p231 = scmp.ne.s32.totalorder %s223, %s225
    %p232 = scmp.eq.s32.totalorder %s21, 1
    %p233 = por %p231, %p232
    %p234 = scmp.ne.s32.totalorder %s225, %s226
    %p235 = scmp.eq.s32.totalorder %s21, 0
    %p236 = por %p234, %p235
    %p237 = scmp.ne.s32.totalorder %s225, %s226
    %p238 = scmp.eq.s32.totalorder %s22, 1
    %p239 = por %p237, %p238
    %p241 = scmp.ne.s32.totalorder %s226, %s240
    %p242 = scmp.eq.s32.totalorder %s22, 0
    %p243 = por %p241, %p242
    %s244 = ssub.s32 %s16, %s23
    %p245 = scmp.eq.s32.totalorder %s244, 0
    %s247 = sadd.s32 %s246, 1
    %s248 = scalar_select %p245, %s246, %s247
    %p251 = pneg %p245
    %p252 = scmp.eq.s32.totalorder %s16, 1
    %p253 = por %p251, %p252
    %p254 = scmp.ne.s32.totalorder %s246, %s249
    %p255 = scmp.eq.s32.totalorder %s16, 0
    %p256 = por %p254, %p255
    %p257 = scmp.ne.s32.totalorder %s246, %s249
    %p258 = scmp.eq.s32.totalorder %s21, 1
    %p259 = por %p257, %p258
    %p260 = scmp.ne.s32.totalorder %s249, %s250
    %p261 = scmp.eq.s32.totalorder %s21, 0
    %p262 = por %p260, %p261
    %p263 = scmp.ne.s32.totalorder %s249, %s250
    %p264 = scmp.eq.s32.totalorder %s22, 1
    %p265 = por %p263, %p264
    %p267 = scmp.ne.s32.totalorder %s250, %s266
    %p268 = scmp.eq.s32.totalorder %s22, 0
    %p269 = por %p267, %p268
    %p270 = scmp.le.s32.totalorder 1, %s16
    %p271 = scmp.lt.s32.totalorder %s16, 3
    %p272 = pnand %p270, %p271
    %p273 = pneg %p272
    // Predicated region
    $region9: #{ffnn_cvae_forward.1} parent=5 // pred_check
      _
    $region10: #{ffnn_cvae_forward.1} parent=5 // pred_check_branch
      %275 = sbr.rel (%p272) target = $region12
    $region11: #{ffnn_cvae_forward.1} parent=5 // pred_region
      %s276 = ssub.s32 %s16, 1
      // Predicated region
      $region13: #{ffnn_cvae_forward.1} parent=11 // pred_check
        %p277 = pneg %p89
      $region14: #{ffnn_cvae_forward.1} parent=11 // pred_check_branch
        %279 = sbr.rel (%p277) target = $region16
      $region15: #{ffnn_cvae_forward.1} parent=11 // pred_region
        _
      $region16: #{ffnn_cvae_forward.1} parent=11 // pred_fallthru
        _
      // Predicated region
      $region17: #{ffnn_cvae_forward.1} parent=11 // pred_check
        %p280 = pneg %p110
      $region18: #{ffnn_cvae_forward.1} parent=11 // pred_check_branch
        %282 = sbr.rel (%p280) target = $region20
      $region19: #{ffnn_cvae_forward.1} parent=11 // pred_region
        _
      $region20: #{ffnn_cvae_forward.1} parent=11 // pred_fallthru
        _
      // Predicated region
      $region21: #{ffnn_cvae_forward.1} parent=11 // pred_check
        %p283 = pneg %p131
      $region22: #{ffnn_cvae_forward.1} parent=11 // pred_check_branch
        %285 = sbr.rel (%p283) target = $region24
      $region23: #{ffnn_cvae_forward.1} parent=11 // pred_region
        _
      $region24: #{ffnn_cvae_forward.1} parent=11 // pred_fallthru
        _
      // Predicated region
      $region25: #{ffnn_cvae_forward.1} parent=11 // pred_check
        %p286 = pneg %p152
      $region26: #{ffnn_cvae_forward.1} parent=11 // pred_check_branch
        %288 = sbr.rel (%p286) target = $region28
      $region27: #{ffnn_cvae_forward.1} parent=11 // pred_region
        _
      $region28: #{ffnn_cvae_forward.1} parent=11 // pred_fallthru
        _
      // Predicated region
      $region29: #{ffnn_cvae_forward.1} parent=11 // pred_check
        %p289 = pneg %p173
      $region30: #{ffnn_cvae_forward.1} parent=11 // pred_check_branch
        %291 = sbr.rel (%p289) target = $region32
      $region31: #{ffnn_cvae_forward.1} parent=11 // pred_region
        _
      $region32: #{ffnn_cvae_forward.1} parent=11 // pred_fallthru
        _
      // Predicated region
      $region33: #{ffnn_cvae_forward.1} parent=11 // pred_check
        %p292 = pneg %p194
      $region34: #{ffnn_cvae_forward.1} parent=11 // pred_check_branch
        %294 = sbr.rel (%p292) target = $region36
      $region35: #{ffnn_cvae_forward.1} parent=11 // pred_region
        _
      $region36: #{ffnn_cvae_forward.1} parent=11 // pred_fallthru
        _
      // Predicated region
      $region37: #{ffnn_cvae_forward.1} parent=11 // pred_check
        %p295 = pneg %p215
      $region38: #{ffnn_cvae_forward.1} parent=11 // pred_check_branch
        %297 = sbr.rel (%p295) target = $region40
      $region39: #{ffnn_cvae_forward.1} parent=11 // pred_region
        _
      $region40: #{ffnn_cvae_forward.1} parent=11 // pred_fallthru
        _
      // Predicated region
      $region41: #{ffnn_cvae_forward.1} parent=11 // pred_check
        %p298 = pneg %p236
      $region42: #{ffnn_cvae_forward.1} parent=11 // pred_check_branch
        %300 = sbr.rel (%p298) target = $region44
      $region43: #{ffnn_cvae_forward.1} parent=11 // pred_region
        _
      $region44: #{ffnn_cvae_forward.1} parent=11 // pred_fallthru
        _
    $region12: #{ffnn_cvae_forward.1} parent=5 // pred_fallthru
      _
    %p301 = scmp.lt.s32.totalorder %s16, 2
    // Predicated region
    $region45: #{ffnn_cvae_forward.1} parent=5 // pred_check
      %p302 = pneg %p301
    $region46: #{ffnn_cvae_forward.1} parent=5 // pred_check_branch
      %304 = sbr.rel (%p302) target = $region48
    $region47: #{ffnn_cvae_forward.1} parent=5 // pred_region
      // Predicated region
      $region49: #{ffnn_cvae_forward.1} parent=47 // pred_check
        %p305 = pneg %p36
      $region50: #{ffnn_cvae_forward.1} parent=47 // pred_check_branch
        %307 = sbr.rel (%p305) target = $region52
      $region51: #{ffnn_cvae_forward.1} parent=47 // pred_region
        %s308 = smul.u32 32, %s16
        %s309 = ssub.s32 63, %s308
        %p310 = scmp.lt.s32.totalorder %s309, 32
        %s311 = scalar_select %p310, %s309, 32
        %s312 = smul.u32 8, %s311
        %p313 = scmp.lt.s32.totalorder %s308, 62
        %s314 = scalar_select %p313, %s308, 62
        %s315 = smul.addr %s314, 8
        %s316 = scalar_lea.vmem %s0, %s315
        %s317 = smul.u32 32, %s16
        %s318 = ssub.s32 63, %s317
        %p319 = scmp.lt.s32.totalorder %s318, 32
        %s320 = scalar_select %p319, %s318, 32
        %s321 = smul.u32 8, %s320
      $region52: #{ffnn_cvae_forward.1} parent=47 // pred_fallthru
        _
      // Predicated region
      $region53: #{ffnn_cvae_forward.1} parent=47 // pred_check
        %p322 = pneg %p62
      $region54: #{ffnn_cvae_forward.1} parent=47 // pred_check_branch
        %324 = sbr.rel (%p322) target = $region56
      $region55: #{ffnn_cvae_forward.1} parent=47 // pred_region
        %s325 = smul.u32 2, %s16
        %p326 = scmp.lt.s32.totalorder %s325, 3
        %s327 = scalar_select %p326, %s325, 3
        %s328 = smul.addr %s327, 8
        %s329 = scalar_lea.vmem %s1, %s328
        %s330 = smul.u32 2, %s16
      $region56: #{ffnn_cvae_forward.1} parent=47 // pred_fallthru
        _
    $region48: #{ffnn_cvae_forward.1} parent=5 // pred_fallthru
      _
    %p331 = scmp.le.s32.totalorder 1, %s16
    %p332 = scmp.lt.s32.totalorder %s16, 3
    %p333 = pnand %p331, %p332
    %p334 = pneg %p333
    // Predicated region
    $region57: #{ffnn_cvae_forward.1} parent=5 // pred_check
      _
    $region58: #{ffnn_cvae_forward.1} parent=5 // pred_check_branch
      %336 = sbr.rel (%p333) target = $region60
    $region59: #{ffnn_cvae_forward.1} parent=5 // pred_region
      %s337 = ssub.s32 %s16, 1
      %s338 = smul.u32 32, %s21
      %s339 = ssub.s32 63, %s338
      %p340 = scmp.lt.s32.totalorder %s339, 32
      %s341 = scalar_select %p340, %s339, 32
      %s342 = smul.u32 8, %s341
      %p343 = scmp.lt.s32.totalorder %s338, 62
      %s344 = scalar_select %p343, %s338, 62
      %s345 = smul.addr %s344, 8
      %s346 = scalar_lea.vmem %s0, %s345
      %p347 = pneg %p42
      %p348 = pneg %p39
      %s349 = smul.u32 2, %s21
      %p350 = scmp.lt.s32.totalorder %s349, 3
      %s351 = scalar_select %p350, %s349, 3
      %s352 = smul.addr %s351, 8
      %s353 = scalar_lea.vmem %s1, %s352
      %p354 = pneg %p68
      %p355 = pneg %p65
      %p356 = pneg %p89
      %p357 = pneg %p86
      %p358 = pneg %p110
      %p359 = pneg %p107
      %p360 = pneg %p131
      %p361 = pneg %p128
      %p362 = pneg %p152
      %p363 = pneg %p149
      %p364 = pneg %p173
      %p365 = pneg %p170
      %p366 = pneg %p194
      %p367 = pneg %p191
      %p368 = pneg %p215
      %p369 = pneg %p212
      %p370 = pneg %p236
      %p371 = pneg %p233
      %p372 = pneg %p262
      %p373 = pneg %p259
      %s374 = smul.u32 2, %s21
      %p375 = scmp.lt.s32.totalorder %s374, 3
      %s376 = scalar_select %p375, %s374, 3
      %s377 = smul.addr %s376, 8
      %s378 = scalar_lea.vmem %s10, %s377
      %s379 = smul.u32 32, %s21
      %s380 = ssub.s32 63, %s379
      %p381 = scmp.lt.s32.totalorder %s380, 32
      %s382 = scalar_select %p381, %s380, 32
      %s383 = smul.u32 8, %s382
      %p384 = scmp.lt.s32.totalorder %s379, 62
      %s385 = scalar_select %p384, %s379, 62
      %s386 = smul.addr %s385, 8
      %s387 = scalar_lea.vmem %s0, %s386
      %s388 = smul.u32 32, %s21
      %s389 = ssub.s32 63, %s388
      %p390 = scmp.lt.s32.totalorder %s389, 32
      %s391 = scalar_select %p390, %s389, 32
      %s392 = smul.u32 8, %s391
      %s393 = smul.u32 2, %s21
      %p394 = scmp.lt.s32.totalorder %s393, 3
      %s395 = scalar_select %p394, %s393, 3
      %s396 = smul.addr %s395, 8
      %s397 = scalar_lea.vmem %s1, %s396
      %s398 = smul.u32 2, %s21
      %s399 = smul.u32 2, %s21
      %p400 = scmp.lt.s32.totalorder %s399, 3
      %s401 = scalar_select %p400, %s399, 3
      %s402 = smul.addr %s401, 8
      %s403 = scalar_lea.vmem %s10, %s402
      %s404 = smul.u32 2, %s21
      %v405 = vld [vmem:[%s387] sm:$0xff]
      %v406 = vld [vmem:[%s387 + $0x8] sm:$0xff]
      %v407 = vld [vmem:[%s387 + $0x10] sm:$0xff]
      %v408 = vld [vmem:[%s387 + $0x18] sm:$0xff]
      %v409 = vld [vmem:[%s387 + $0x20] sm:$0xff]
      %v410 = vld [vmem:[%s387 + $0x28] sm:$0xff]
      %v411 = vld [vmem:[%s387 + $0x30] sm:$0xff]
      %v412 = vld [vmem:[%s387 + $0x38] sm:$0xff]
      %v413 = vld [vmem:[%s387 + $0x40] sm:$0xff]
      %v414 = vld [vmem:[%s387 + $0x48] sm:$0xff]
      %v415 = vld [vmem:[%s387 + $0x50] sm:$0xff]
      %v416 = vld [vmem:[%s387 + $0x58] sm:$0xff]
      %v417 = vld [vmem:[%s387 + $0x60] sm:$0xff]
      %v418 = vld [vmem:[%s387 + $0x68] sm:$0xff]
      %v419 = vld [vmem:[%s387 + $0x70] sm:$0xff]
      %v420 = vld [vmem:[%s387 + $0x78] sm:$0xff]
      %v421 = vld [vmem:[%s387 + $0x80] sm:$0xff]
      %v422 = vld [vmem:[%s387 + $0x88] sm:$0xff]
      %v423 = vld [vmem:[%s387 + $0x90] sm:$0xff]
      %v424 = vld [vmem:[%s387 + $0x98] sm:$0xff]
      %v425 = vld [vmem:[%s387 + $0xa0] sm:$0xff]
      %v426 = vld [vmem:[%s387 + $0xa8] sm:$0xff]
      %v427 = vld [vmem:[%s387 + $0xb0] sm:$0xff]
      %v428 = vld [vmem:[%s387 + $0xb8] sm:$0xff]
      %v429 = vld [vmem:[%s387 + $0xc0] sm:$0xff]
      %v430 = vld [vmem:[%s387 + $0xc8] sm:$0xff]
      %v431 = vld [vmem:[%s387 + $0xd0] sm:$0xff]
      %v432 = vld [vmem:[%s387 + $0xd8] sm:$0xff]
      %v433 = vld [vmem:[%s387 + $0xe0] sm:$0xff]
      %v434 = vld [vmem:[%s387 + $0xe8] sm:$0xff]
      %v435 = vld [vmem:[%s387 + $0xf0] sm:$0xff]
      %v436 = vld [vmem:[%s387 + $0xf8] sm:$0xff]
      %v437 = vld [vmem:[%s2] sm:$0xff]
      %v438 = vld [vmem:[%s2 + $0x8] sm:$0xff]
      %v439 = vld [vmem:[%s2 + $0x10] sm:$0xff]
      %v440 = vld [vmem:[%s2 + $0x18] sm:$0x3]
      %v441 = vld [vmem:[%s6] sm:$0xff]
      %v442 = vld [vmem:[%s6 + $0x8] sm:$0xff]
      %v443 = vld [vmem:[%s6 + $0x10] sm:$0xff]
      %v444 = vld [vmem:[%s6 + $0x18] sm:$0x3]
      %446 = vset.pattern.permute.xlu0 0
      %447 = vperm.xlu0 %446, %v441
      %v448 = vpop.permute.xlu0 %447
      %451 = vset.pattern.permute.xlu0 0
      %452 = vperm.xlu0 %451, %v442
      %v453 = vpop.permute.xlu0 %452
      %456 = vset.pattern.permute.xlu0 0
      %457 = vperm.xlu0 %456, %v443
      %v458 = vpop.permute.xlu0 %457
      %461 = vset.pattern.permute.xlu0 0
      %462 = vperm.xlu0 %461, %v444
      %v463 = vpop.permute.xlu0 %462
      %vm465 = vcmask 261120
      %v467 = vsel %vm465, %v437, 0
      %v470 = vsel %vm465, %v438, 0
      %v473 = vsel %vm465, %v439, 0
      %v476 = vsel %vm465, %v440, 0
      %v479 = vsel %vm465, %v405, 0
      %v482 = vsel %vm465, %v406, 0
      %v485 = vsel %vm465, %v407, 0
      %v488 = vsel %vm465, %v408, 0
      %v491 = vsel %vm465, %v409, 0
      %v494 = vsel %vm465, %v410, 0
      %v497 = vsel %vm465, %v411, 0
      %v500 = vsel %vm465, %v412, 0
      %v503 = vsel %vm465, %v413, 0
      %v506 = vsel %vm465, %v414, 0
      %v509 = vsel %vm465, %v415, 0
      %v512 = vsel %vm465, %v416, 0
      %v515 = vsel %vm465, %v417, 0
      %v518 = vsel %vm465, %v418, 0
      %v521 = vsel %vm465, %v419, 0
      %v524 = vsel %vm465, %v420, 0
      %v527 = vsel %vm465, %v421, 0
      %v530 = vsel %vm465, %v422, 0
      %v533 = vsel %vm465, %v423, 0
      %v536 = vsel %vm465, %v424, 0
      %v539 = vsel %vm465, %v425, 0
      %v542 = vsel %vm465, %v426, 0
      %v545 = vsel %vm465, %v427, 0
      %v548 = vsel %vm465, %v428, 0
      %v551 = vsel %vm465, %v429, 0
      %v554 = vsel %vm465, %v430, 0
      %v557 = vsel %vm465, %v431, 0
      %v560 = vsel %vm465, %v432, 0
      %v563 = vsel %vm465, %v433, 0
      %v566 = vsel %vm465, %v434, 0
      %v569 = vsel %vm465, %v435, 0
      %v572 = vsel %vm465, %v436, 0
      %574 = vmatpush.xpose.msra.mxu0 %v524
      %575 = vmatpush.xpose.msra.mxu0 %v521
      %576 = vmatpush.xpose.msra.mxu0 %v518
      %577 = vmatpush.xpose.msra.mxu0 %v515
      %578 = vmatpush.xpose.msra.mxu0 %v512
      %579 = vmatpush.xpose.msra.mxu0 %v509
      %580 = vmatpush.xpose.msra.mxu0 %v506
      %581 = vmatpush.xpose.msra.mxu0 %v503
      %582 = vmatpush.xpose.msra.mxu0 %v500
      %583 = vmatpush.xpose.msra.mxu0 %v497
      %584 = vmatpush.xpose.msra.mxu0 %v494
      %585 = vmatpush.xpose.msra.mxu0 %v491
      %586 = vmatpush.xpose.msra.mxu0 %v488
      %587 = vmatpush.xpose.msra.mxu0 %v485
      %588 = vmatpush.xpose.msra.mxu0 %v482
      %589 = vmatpush.xpose.msra.mxu0 %v479
      %590 = vmatmul.f32.gmra.mxu0 %v467
      %v591 = vpop.f32.mrf.mxu0
      %v592 = vadd.f32 %v448, %v591
      %593 = vmatmul.f32.gmra.mxu0 %v470
      %v594 = vpop.f32.mrf.mxu0
      %v595 = vadd.f32 %v453, %v594
      %596 = vmatmul.f32.gmra.mxu0 %v473
      %v597 = vpop.f32.mrf.mxu0
      %v598 = vadd.f32 %v458, %v597
      %599 = vmatmul.f32.gmra.mxu0 %v476
      %v600 = vpop.f32.mrf.mxu0
      %v601 = vadd.f32 %v463, %v600
      %602 = vdwg.mxu0
      %603 = vmatpush.xpose.msra.mxu0 %v572
      %604 = vmatpush.xpose.msra.mxu0 %v569
      %605 = vmatpush.xpose.msra.mxu0 %v566
      %606 = vmatpush.xpose.msra.mxu0 %v563
      %607 = vmatpush.xpose.msra.mxu0 %v560
      %608 = vmatpush.xpose.msra.mxu0 %v557
      %609 = vmatpush.xpose.msra.mxu0 %v554
      %610 = vmatpush.xpose.msra.mxu0 %v551
      %611 = vmatpush.xpose.msra.mxu0 %v548
      %612 = vmatpush.xpose.msra.mxu0 %v545
      %613 = vmatpush.xpose.msra.mxu0 %v542
      %614 = vmatpush.xpose.msra.mxu0 %v539
      %615 = vmatpush.xpose.msra.mxu0 %v536
      %616 = vmatpush.xpose.msra.mxu0 %v533
      %617 = vmatpush.xpose.msra.mxu0 %v530
      %618 = vmatpush.xpose.msra.mxu0 %v527
      %619 = vmatmul.f32.gmra.mxu0 %v467
      %v620 = vpop.f32.mrf.mxu0
      %v621 = vadd.f32 %v448, %v620
      %622 = vmatmul.f32.gmra.mxu0 %v470
      %v623 = vpop.f32.mrf.mxu0
      %v624 = vadd.f32 %v453, %v623
      %625 = vmatmul.f32.gmra.mxu0 %v473
      %v626 = vpop.f32.mrf.mxu0
      %v627 = vadd.f32 %v458, %v626
      %628 = vmatmul.f32.gmra.mxu0 %v476
      %v629 = vpop.f32.mrf.mxu0
      %v630 = vadd.f32 %v463, %v629
      %631 = vdwg.mxu0
      %v632 = vmax.f32 %v592, 0.0
      %v633 = vmax.f32 %v621, 0.0
      %v634 = vmax.f32 %v595, 0.0
      %v635 = vmax.f32 %v624, 0.0
      %v636 = vmax.f32 %v598, 0.0
      %v637 = vmax.f32 %v627, 0.0
      %v638 = vmax.f32 %v601, 0.0
      %v639 = vmax.f32 %v630, 0.0
      %v640 = vld [vmem:[%s3] sm:$0xff]
      %v641 = vld [vmem:[%s3 + $0x8] sm:$0x1f]
      %v642 = vld [vmem:[%s7] sm:$0xff]
      %v643 = vld [vmem:[%s7 + $0x8] sm:$0x1f]
      %645 = vset.pattern.permute.xlu0 0
      %646 = vperm.xlu0 %645, %v642
      %v647 = vpop.permute.xlu0 %646
      %650 = vset.pattern.permute.xlu0 0
      %651 = vperm.xlu0 %650, %v643
      %v652 = vpop.permute.xlu0 %651
      %vm654 = vcmask 211968
      %v656 = vsel %vm654, %v640, 0
      %v659 = vsel %vm654, %v641, 0
      %vm661 = vcmask 1041408
      %v663 = vsel %vm661, %v638, 0
      %v666 = vsel %vm661, %v639, 0
      %668 = vmatpush.msra.mxu0 0.0
      %669 = vmatpush.msra.mxu0 0.0
      %670 = vmatpush.msra.mxu0 0.0
      %671 = vmatpush.msra.mxu0 0.0
      %672 = vmatpush.msra.mxu0 0.0
      %673 = vmatpush.msra.mxu0 0.0
      %674 = vmatpush.msra.mxu0 0.0
      %675 = vmatpush.msra.mxu0 0.0
      %676 = vmatpush.msra.mxu0 0.0
      %677 = vmatpush.msra.mxu0 0.0
      %678 = vmatpush.msra.mxu0 0.0
      %679 = vmatpush.msra.mxu0 0.0
      %680 = vmatpush.msra.mxu0 %v663
      %681 = vmatpush.msra.mxu0 %v636
      %682 = vmatpush.msra.mxu0 %v634
      %683 = vmatpush.msra.mxu0 %v632
      %684 = vmatmul.f32.gmra.mxu0 %v656
      %v685 = vpop.f32.mrf.mxu0
      %v686 = vadd.f32 %v647, %v685
      %687 = vmatmul.f32.gmra.mxu0 %v659
      %v688 = vpop.f32.mrf.mxu0
      %v689 = vadd.f32 %v652, %v688
      %690 = vdwg.mxu0
      %691 = vmatpush.msra.mxu0 0.0
      %692 = vmatpush.msra.mxu0 0.0
      %693 = vmatpush.msra.mxu0 0.0
      %694 = vmatpush.msra.mxu0 0.0
      %695 = vmatpush.msra.mxu0 0.0
      %696 = vmatpush.msra.mxu0 0.0
      %697 = vmatpush.msra.mxu0 0.0
      %698 = vmatpush.msra.mxu0 0.0
      %699 = vmatpush.msra.mxu0 0.0
      %700 = vmatpush.msra.mxu0 0.0
      %701 = vmatpush.msra.mxu0 0.0
      %702 = vmatpush.msra.mxu0 0.0
      %703 = vmatpush.msra.mxu0 %v666
      %704 = vmatpush.msra.mxu0 %v637
      %705 = vmatpush.msra.mxu0 %v635
      %706 = vmatpush.msra.mxu0 %v633
      %707 = vmatmul.f32.gmra.mxu0 %v656
      %v708 = vpop.f32.mrf.mxu0
      %v709 = vadd.f32 %v647, %v708
      %710 = vmatmul.f32.gmra.mxu0 %v659
      %v711 = vpop.f32.mrf.mxu0
      %v712 = vadd.f32 %v652, %v711
      %713 = vdwg.mxu0
      %v714 = vmax.f32 %v686, 0.0
      %v715 = vmax.f32 %v709, 0.0
      %v716 = vmax.f32 %v689, 0.0
      %v717 = vmax.f32 %v712, 0.0
      %v718 = vld [vmem:[%s4] sm:$0xff]
      %v719 = vld [vmem:[%s8] sm:$0xff]
      %721 = vset.pattern.permute.xlu0 0
      %722 = vperm.xlu0 %721, %v719
      %v723 = vpop.permute.xlu0 %722
      %vm725 = vcmask 105472
      %v727 = vsel %vm725, %v718, 0
      %vm729 = vcmask 1044480
      %v731 = vsel %vm729, %v716, 0
      %v734 = vsel %vm729, %v717, 0
      %736 = vmatpush.msra.mxu0 0.0
      %737 = vmatpush.msra.mxu0 0.0
      %738 = vmatpush.msra.mxu0 0.0
      %739 = vmatpush.msra.mxu0 0.0
      %740 = vmatpush.msra.mxu0 0.0
      %741 = vmatpush.msra.mxu0 0.0
      %742 = vmatpush.msra.mxu0 0.0
      %743 = vmatpush.msra.mxu0 0.0
      %744 = vmatpush.msra.mxu0 0.0
      %745 = vmatpush.msra.mxu0 0.0
      %746 = vmatpush.msra.mxu0 0.0
      %747 = vmatpush.msra.mxu0 0.0
      %748 = vmatpush.msra.mxu0 0.0
      %749 = vmatpush.msra.mxu0 0.0
      %750 = vmatpush.msra.mxu0 %v731
      %751 = vmatpush.msra.mxu0 %v714
      %752 = vmatmul.f32.gmra.mxu0 %v727
      %v753 = vpop.f32.mrf.mxu0
      %v754 = vadd.f32 %v723, %v753
      %755 = vdwg.mxu0
      %756 = vmatpush.msra.mxu0 0.0
      %757 = vmatpush.msra.mxu0 0.0
      %758 = vmatpush.msra.mxu0 0.0
      %759 = vmatpush.msra.mxu0 0.0
      %760 = vmatpush.msra.mxu0 0.0
      %761 = vmatpush.msra.mxu0 0.0
      %762 = vmatpush.msra.mxu0 0.0
      %763 = vmatpush.msra.mxu0 0.0
      %764 = vmatpush.msra.mxu0 0.0
      %765 = vmatpush.msra.mxu0 0.0
      %766 = vmatpush.msra.mxu0 0.0
      %767 = vmatpush.msra.mxu0 0.0
      %768 = vmatpush.msra.mxu0 0.0
      %769 = vmatpush.msra.mxu0 0.0
      %770 = vmatpush.msra.mxu0 %v734
      %771 = vmatpush.msra.mxu0 %v715
      %772 = vmatmul.f32.gmra.mxu0 %v727
      %v773 = vpop.f32.mrf.mxu0
      %v774 = vadd.f32 %v723, %v773
      %775 = vdwg.mxu0
      %v776 = vld [vmem:[%s5] sm:$0xff]
      %v777 = vld [vmem:[%s9] sm:$0xff]
      %779 = vset.pattern.permute.xlu0 0
      %780 = vperm.xlu0 %779, %v777
      %v781 = vpop.permute.xlu0 %780
      %v784 = vsel %vm725, %v776, 0
      %786 = vmatpush.msra.mxu0 0.0
      %787 = vmatpush.msra.mxu0 0.0
      %788 = vmatpush.msra.mxu0 0.0
      %789 = vmatpush.msra.mxu0 0.0
      %790 = vmatpush.msra.mxu0 0.0
      %791 = vmatpush.msra.mxu0 0.0
      %792 = vmatpush.msra.mxu0 0.0
      %793 = vmatpush.msra.mxu0 0.0
      %794 = vmatpush.msra.mxu0 0.0
      %795 = vmatpush.msra.mxu0 0.0
      %796 = vmatpush.msra.mxu0 0.0
      %797 = vmatpush.msra.mxu0 0.0
      %798 = vmatpush.msra.mxu0 0.0
      %799 = vmatpush.msra.mxu0 0.0
      %800 = vmatpush.msra.mxu0 %v731
      %801 = vmatpush.msra.mxu0 %v714
      %802 = vmatmul.f32.gmra.mxu0 %v784
      %v803 = vpop.f32.mrf.mxu0
      %v804 = vadd.f32 %v781, %v803
      %805 = vdwg.mxu0
      %806 = vmatpush.msra.mxu0 0.0
      %807 = vmatpush.msra.mxu0 0.0
      %808 = vmatpush.msra.mxu0 0.0
      %809 = vmatpush.msra.mxu0 0.0
      %810 = vmatpush.msra.mxu0 0.0
      %811 = vmatpush.msra.mxu0 0.0
      %812 = vmatpush.msra.mxu0 0.0
      %813 = vmatpush.msra.mxu0 0.0
      %814 = vmatpush.msra.mxu0 0.0
      %815 = vmatpush.msra.mxu0 0.0
      %816 = vmatpush.msra.mxu0 0.0
      %817 = vmatpush.msra.mxu0 0.0
      %818 = vmatpush.msra.mxu0 0.0
      %819 = vmatpush.msra.mxu0 0.0
      %820 = vmatpush.msra.mxu0 %v734
      %821 = vmatpush.msra.mxu0 %v715
      %822 = vmatmul.f32.gmra.mxu0 %v784
      %v823 = vpop.f32.mrf.mxu0
      %v824 = vadd.f32 %v781, %v823
      %825 = vdwg.mxu0
      %v826 = vld [vmem:[%s397] sm:$0xff]
      %v827 = vld [vmem:[%s397 + $0x8] sm:$0xff]
      %v828 = vmul.f32 %v804, 0.5
      %v829 = vmul.f32 %v824, 0.5
      %v830 = vmul.f32 %v828, 1.442695
      %v831 = vpow.pop %v830
      %v832 = vmul.f32 %v829, 1.442695
      %v833 = vpow.pop %v832
      %v834 = vmul.f32 %v826, %v831
      %v835 = vmul.f32 %v827, %v833
      %v836 = vadd.f32 %v754, %v834
      %v837 = vadd.f32 %v774, %v835
      %838 = vst [vmem:[%s403] sm:$0xff] %v836
      %839 = vst [vmem:[%s403 + $0x8] sm:$0xff] %v837
      %s840 = smul.u32 2, %s21
      %p841 = scmp.lt.s32.totalorder %s840, 3
      %s842 = scalar_select %p841, %s840, 3
      %s843 = smul.addr %s842, 8
      %s844 = scalar_lea.vmem %s10, %s843
      // Predicated region
      $region61: #{ffnn_cvae_forward.1} parent=59 // pred_check
        %p845 = pneg %p259
      $region62: #{ffnn_cvae_forward.1} parent=59 // pred_check_branch
        %847 = sbr.rel (%p845) target = $region64
      $region63: #{ffnn_cvae_forward.1} parent=59 // pred_region
        %s848 = smul.u32 2, %s21
      $region64: #{ffnn_cvae_forward.1} parent=59 // pred_fallthru
        _
    $region60: #{ffnn_cvae_forward.1} parent=5 // pred_fallthru
      _
    %p849 = scmp.le.s32.totalorder 2, %s16
    // Predicated region
    $region65: #{ffnn_cvae_forward.1} parent=5 // pred_check
      %p850 = pneg %p849
    $region66: #{ffnn_cvae_forward.1} parent=5 // pred_check_branch
      %852 = sbr.rel (%p850) target = $region68
    $region67: #{ffnn_cvae_forward.1} parent=5 // pred_region
      %s853 = ssub.s32 %s16, 2
      // Predicated region
      $region69: #{ffnn_cvae_forward.1} parent=67 // pred_check
        %p854 = pneg %p265
      $region70: #{ffnn_cvae_forward.1} parent=67 // pred_check_branch
        %856 = sbr.rel (%p854) target = $region72
      $region71: #{ffnn_cvae_forward.1} parent=67 // pred_region
        %s857 = smul.u32 2, %s22
        %p858 = scmp.lt.s32.totalorder %s857, 3
        %s859 = scalar_select %p858, %s857, 3
        %s860 = smul.addr %s859, 8
        %s861 = scalar_lea.vmem %s10, %s860
      $region72: #{ffnn_cvae_forward.1} parent=67 // pred_fallthru
        _
    $region68: #{ffnn_cvae_forward.1} parent=5 // pred_fallthru
      _
  $region6: #{ffnn_cvae_forward.1} parent=0 // loop_footer
    %s20 = sadd.s32 1, %s16
  $region7: #{ffnn_cvae_forward.1} parent=0 // loop_footer_branch
    %15 = sbr.rel target = $region3
  $region8: #{ffnn_cvae_forward.1} parent=0 // loop_exit
    _

</llo_original>
